<compile_context>
chip_gen: v6e
topology: v6e:2x2x1
jax: 0.10.0
libtpu: 0.0.40
codegen_flags: <defaults>
</compile_context>

<pallas_src>
import functools

import jax
import jax.numpy as jnp
from jax import lax
from jax.experimental import pallas as pl
from jax.experimental.pallas import tpu as pltpu


# ------------------------------ Pallas kernel ------------------------------- #

def _basic_block_sem_kernel(p_ref, w_ref, shift_ref, w1t_ref, w2t_ref, o_ref, *, inv_hw):
    """Fused conv(1 matmul) + folded-BN + ChannelAttention + scale + ReLU.

    p_ref    : (G, K, HW)      im2col patches for G images (K = KH*KW*Cin)
    w_ref    : (Cout, K)       BN-scale-folded conv weights (transposed)
    shift_ref: (Cout, 1)       folded BN shift
    w1t_ref  : (hidden, Cout)  attention fc1 (transposed)
    w2t_ref  : (Cout, hidden)  attention fc2 (transposed)
    o_ref    : (G, Cout, HW)   output, natively NCHW-flattened
    """
    G = p_ref.shape[0]
    w = w_ref[...]
    shift = shift_ref[...]
    w1t = w1t_ref[...]
    w2t = w2t_ref[...]

    for g in range(G):                                       # static unrolled loop
        # conv3x3 + BN (scale folded into w, shift added here): one K=KH*KW*Cin matmul.
        y = jnp.dot(w, p_ref[g], preferred_element_type=jnp.float32) + shift   # (Cout, HW)

        # ChannelAttention: global avg / max pool over the spatial (lane) axis.
        avg = jnp.sum(y, axis=1, keepdims=True) * inv_hw     # (Cout, 1)
        mx = jnp.max(y, axis=1, keepdims=True)               # (Cout, 1)
        pooled = jnp.concatenate([avg, mx], axis=1)          # (Cout, 2) - both branches

        # Fused two-branch MLP: relu is row-wise, so stacking the branches as columns
        # is exact; sum of the two result columns == mlp(avg) + mlp(max).
        h = jnp.maximum(jnp.dot(w1t, pooled, preferred_element_type=jnp.float32), 0.0)  # (hidden, 2)
        z2 = jnp.dot(w2t, h, preferred_element_type=jnp.float32)                        # (Cout, 2)
        z = z2[:, 0:1] + z2[:, 1:2]                          # (Cout, 1)
        att = 1.0 / (1.0 + jnp.exp(-z))                      # sigmoid (EUP)

        o_ref[g] = jnp.maximum(att * y, 0.0).astype(o_ref.dtype)


def _pick_imgs_per_step(batch):
    """Images per grid step: amortize per-step overhead, but keep >=2 grid steps
    (v7x has two TensorCores fed by the 'parallel' batch axis)."""
    target = min(8, max(1, batch // 2))
    g = 1
    for cand in range(1, target + 1):
        if batch % cand == 0:
            g = cand
    return g


def _basic_block_sem_pallas(patches, wt, shift, w1t, w2t):
    B, K, HW = patches.shape
    Cout = wt.shape[0]
    hidden = w1t.shape[0]
    G = _pick_imgs_per_step(B)

    kernel = functools.partial(_basic_block_sem_kernel, inv_hw=1.0 / HW)
    return pl.pallas_call(
        kernel,
        out_shape=jax.ShapeDtypeStruct((B, Cout, HW), jnp.float32),
        grid=(B // G,),
        in_specs=[
            pl.BlockSpec((G, K, HW), lambda b: (b, 0, 0)),        # im2col patches
            pl.BlockSpec((Cout, K), lambda b: (0, 0)),            # folded conv weights^T
            pl.BlockSpec((Cout, 1), lambda b: (0, 0)),            # folded BN shift
            pl.BlockSpec((hidden, Cout), lambda b: (0, 0)),       # fc1^T
            pl.BlockSpec((Cout, hidden), lambda b: (0, 0)),       # fc2^T
        ],
        out_specs=pl.BlockSpec((G, Cout, HW), lambda b: (b, 0, 0)),
        compiler_params=pltpu.CompilerParams(dimension_semantics=("parallel",)),
    )(patches, wt, shift, w1t, w2t)


# ------------------------------ host wrapper -------------------------------- #

@jax.jit
def basic_block_sem_forward(x_nchw, p):
    """BasicBlockSem forward (eval-mode BatchNorm). x: (B, Cin, H, W) NCHW."""
    eps = 1e-5
    B, Cin, H, W = x_nchw.shape
    w = p["w"]                                   # HWIO (KH, KW, Cin, Cout)
    KH, KW, _, Cout = w.shape

    # Fold BN (running stats) into the conv weights; conv itself has no bias.
    scale = p["gamma"] / jnp.sqrt(p["var"] + eps)
    shift = (p["beta"] - p["mean"] * scale).reshape(Cout, 1)
    wt = (w * scale).reshape(KH * KW * Cin, Cout).T          # (Cout, K), K=(kh,kw,cin)

    # Host-side im2col in NCHW (SAME zero-pad, stride 1); K ordering matches wt.
    ph, pw = KH // 2, KW // 2
    xp = jnp.pad(x_nchw, ((0, 0), (0, 0), (ph, ph), (pw, pw)))
    taps = [xp[:, :, kh:kh + H, kw:kw + W] for kh in range(KH) for kw in range(KW)]
    patches = jnp.stack(taps, axis=1)                        # (B, KH*KW, Cin, H, W)
    patches = patches.reshape(B, KH * KW * Cin, H * W)       # (B, K, H*W)

    w1t = p["w_fc1"].T                                       # (hidden, Cout)
    w2t = p["w_fc2"].T                                       # (Cout, hidden)

    out = _basic_block_sem_pallas(patches, wt, shift, w1t, w2t)   # (B, Cout, H*W)
    return out.reshape(B, Cout, H, W)                        # free reshape, already NCHW


# --------------------------------- params ------------------------------------ #

def init_params(key, in_channels, out_channels, kernel_size=3):
    hidden = max(out_channels // 16, 1)          # ChannelAttention ratio 16
    ks = jax.random.split(key, 7)
    p = {}
    p["w"] = 0.1 * jax.random.normal(
        ks[0], (kernel_size, kernel_size, in_channels, out_channels), jnp.float32)
    p["gamma"] = 1.0 + 0.1 * jax.random.normal(ks[1], (out_channels,), jnp.float32)
    p["beta"] = 0.1 * jax.random.normal(ks[2], (out_channels,), jnp.float32)
    p["mean"] = 0.05 * jax.random.normal(ks[3], (out_channels,), jnp.float32)
    p["var"] = 0.5 + jnp.abs(0.1 * jax.random.normal(ks[4], (out_channels,), jnp.float32))
    p["w_fc1"] = 0.2 * jax.random.normal(ks[5], (out_channels, hidden), jnp.float32)
    p["w_fc2"] = 0.2 * jax.random.normal(ks[6], (hidden, out_channels), jnp.float32)
    return p


# ------------------------------- reference ----------------------------------- #

def _ref_forward(x_nchw, p):
    eps = 1e-5
    dn = ("NHWC", "HWIO", "NHWC")
    x = jnp.transpose(x_nchw, (0, 2, 3, 1))
    conv = lax.conv_general_dilated(x, p["w"], (1, 1), "SAME", dimension_numbers=dn)
    scale = p["gamma"] / jnp.sqrt(p["var"] + eps)
    y = (conv - p["mean"]) * scale + p["beta"]               # BN (eval mode)
    avg = jnp.mean(y, axis=(1, 2))                           # (B, C)
    mx = jnp.max(y, axis=(1, 2))                             # (B, C)

    def mlp(v):
        return jnp.maximum(v @ p["w_fc1"], 0.0) @ p["w_fc2"]

    att = jax.nn.sigmoid(mlp(avg) + mlp(mx))                 # (B, C)
    out = jnp.maximum(att[:, None, None, :] * y, 0.0)
    return jnp.transpose(out, (0, 3, 1, 2))


# --------------------------------- main --------------------------------------- #

if __name__ == "__main__":
    key = jax.random.PRNGKey(0)
    kx, kp = jax.random.split(key)

    # BasicBlockSem(in_planes=4, out_planes=32, kernel_size=3, stride=1, padding=1)
    # out_planes must be >= 16 so ChannelAttention's hidden dim (out_planes//16) >= 1.
    B, Cin, H, W = 2, 4, 16, 16
    Cout = 32
    x = jax.random.normal(kx, (B, Cin, H, W), jnp.float32)
    params = init_params(kp, Cin, Cout)

    out = jax.block_until_ready(basic_block_sem_forward(x, params))
    ref = jax.block_until_ready(_ref_forward(x, params))

    assert out.shape == (B, Cout, H, W), out.shape
    max_err = float(jnp.max(jnp.abs(out - ref)))
    assert jnp.allclose(out, ref, atol=1e-3, rtol=1e-3), max_err

    print("KERNEL_OK")
</pallas_src>

<mosaic_0001>
module attributes {stable_mosaic.version = 11 : i64} {
  func.func @_basic_block_sem_kernel(%arg0: i32, %arg1: memref<1x36x256xf32, #tpu.memory_space<vmem>>, %arg2: memref<32x36xf32, #tpu.memory_space<vmem>>, %arg3: memref<32x1xf32, #tpu.memory_space<vmem>>, %arg4: memref<2x32xf32, #tpu.memory_space<vmem>>, %arg5: memref<32x2xf32, #tpu.memory_space<vmem>>, %arg6: memref<1x32x256xf32, #tpu.memory_space<vmem>>) attributes {dimension_semantics = [#tpu.dimension_semantics<parallel>], iteration_bounds = array<i64: 2>, scalar_prefetch = 0 : i64, scratch_operands = 0 : i64, tpu.core_type = #tpu.core_type<tc>, window_params = [{transform_indices = @transform_0, window_bounds = array<i64: 1, 36, 256>}, {pipeline_mode = #tpu.pipeline_mode<synchronous>, transform_indices = @transform_1, window_bounds = array<i64: 32, 36>}, {pipeline_mode = #tpu.pipeline_mode<synchronous>, transform_indices = @transform_2, window_bounds = array<i64: 32, 1>}, {pipeline_mode = #tpu.pipeline_mode<synchronous>, transform_indices = @transform_3, window_bounds = array<i64: 2, 32>}, {pipeline_mode = #tpu.pipeline_mode<synchronous>, transform_indices = @transform_4, window_bounds = array<i64: 32, 2>}, {transform_indices = @transform_5, window_bounds = array<i64: 1, 32, 256>}]} {
    %c0 = arith.constant 0 : index
    %c0_0 = arith.constant 0 : index
    %0 = vector.load %arg2[%c0, %c0_0] : memref<32x36xf32, #tpu.memory_space<vmem>>, vector<32x36xf32>
    %c0_1 = arith.constant 0 : index
    %c0_2 = arith.constant 0 : index
    %1 = vector.load %arg3[%c0_1, %c0_2] : memref<32x1xf32, #tpu.memory_space<vmem>>, vector<32x1xf32>
    %c0_3 = arith.constant 0 : index
    %c0_4 = arith.constant 0 : index
    %2 = vector.load %arg4[%c0_3, %c0_4] : memref<2x32xf32, #tpu.memory_space<vmem>>, vector<2x32xf32>
    %c0_5 = arith.constant 0 : index
    %c0_6 = arith.constant 0 : index
    %3 = vector.load %arg5[%c0_5, %c0_6] : memref<32x2xf32, #tpu.memory_space<vmem>>, vector<32x2xf32>
    %c0_7 = arith.constant 0 : index
    %c0_8 = arith.constant 0 : index
    %c0_9 = arith.constant 0 : index
    %4 = vector.load %arg1[%c0_7, %c0_8, %c0_9] : memref<1x36x256xf32, #tpu.memory_space<vmem>>, vector<1x36x256xf32>
    %5 = vector.shape_cast %4 : vector<1x36x256xf32> to vector<36x256xf32>
    %cst = arith.constant dense<0.000000e+00> : vector<32x256xf32>
    %6 = tpu.matmul %0, %5, %cst {dimension_numbers = #tpu.dot_dimension_numbers<[1], [0], [0], [1], [0, 0, 1, 1], [], []>} : vector<32x36xf32>, vector<36x256xf32>, vector<32x256xf32> -> vector<32x256xf32>
    %7 = vector.broadcast %1 : vector<32x1xf32> to vector<32x256xf32>
    %8 = arith.addf %6, %7 : vector<32x256xf32>
    %cst_10 = arith.constant dense<0.000000e+00> : vector<32xf32>
    %9 = vector.multi_reduction <add>, %8, %cst_10 [1] : vector<32x256xf32> to vector<32xf32>
    %10 = vector.shape_cast %9 : vector<32xf32> to vector<32x1xf32>
    %cst_11 = arith.constant 3.906250e-03 : f32
    %11 = vector.broadcast %cst_11 : f32 to vector<32x1xf32>
    %12 = arith.mulf %10, %11 : vector<32x1xf32>
    %cst_12 = arith.constant dense<0xFF800000> : vector<32xf32>
    %13 = vector.multi_reduction <maximumf>, %8, %cst_12 [1] : vector<32x256xf32> to vector<32xf32>
    %14 = vector.shape_cast %13 : vector<32xf32> to vector<32x1xf32>
    %15 = tpu.concatenate %12, %14 in 1 : vector<32x1xf32>, vector<32x1xf32> -> vector<32x2xf32>
    %cst_13 = arith.constant dense<0.000000e+00> : vector<2x2xf32>
    %16 = tpu.matmul %2, %15, %cst_13 {dimension_numbers = #tpu.dot_dimension_numbers<[1], [0], [0], [1], [0, 0, 1, 1], [], []>} : vector<2x32xf32>, vector<32x2xf32>, vector<2x2xf32> -> vector<2x2xf32>
    %cst_14 = arith.constant 0.000000e+00 : f32
    %17 = vector.broadcast %cst_14 : f32 to vector<2x2xf32>
    %18 = arith.maximumf %16, %17 : vector<2x2xf32>
    %cst_15 = arith.constant dense<0.000000e+00> : vector<32x2xf32>
    %19 = tpu.matmul %3, %18, %cst_15 {dimension_numbers = #tpu.dot_dimension_numbers<[1], [0], [0], [1], [0, 0, 1, 1], [], []>} : vector<32x2xf32>, vector<2x2xf32>, vector<32x2xf32> -> vector<32x2xf32>
    %20 = vector.extract_strided_slice %19 {offsets = [0, 0], sizes = [32, 1], strides = [1, 1]} : vector<32x2xf32> to vector<32x1xf32>
    %21 = vector.extract_strided_slice %19 {offsets = [0, 1], sizes = [32, 1], strides = [1, 1]} : vector<32x2xf32> to vector<32x1xf32>
    %22 = arith.addf %20, %21 : vector<32x1xf32>
    %cst_16 = arith.constant 0.000000e+00 : f32
    %23 = vector.broadcast %cst_16 : f32 to vector<32x1xf32>
    %24 = arith.subf %23, %22 : vector<32x1xf32>
    %25 = math.exp %24 : vector<32x1xf32>
    %cst_17 = arith.constant 1.000000e+00 : f32
    %26 = vector.broadcast %cst_17 : f32 to vector<32x1xf32>
    %27 = arith.addf %26, %25 : vector<32x1xf32>
    %cst_18 = arith.constant 1.000000e+00 : f32
    %28 = vector.broadcast %cst_18 : f32 to vector<32x1xf32>
    %29 = arith.divf %28, %27 : vector<32x1xf32>
    %30 = vector.broadcast %29 : vector<32x1xf32> to vector<32x256xf32>
    %31 = arith.mulf %30, %8 : vector<32x256xf32>
    %cst_19 = arith.constant 0.000000e+00 : f32
    %32 = vector.broadcast %cst_19 : f32 to vector<32x256xf32>
    %33 = arith.maximumf %31, %32 : vector<32x256xf32>
    %c0_20 = arith.constant 0 : index
    %c0_21 = arith.constant 0 : index
    %c0_22 = arith.constant 0 : index
    %34 = vector.load %arg6[%c0_20, %c0_21, %c0_22] : memref<1x32x256xf32, #tpu.memory_space<vmem>>, vector<1x32x256xf32>
    %35 = vector.shape_cast %34 : vector<1x32x256xf32> to vector<32x256xf32>
    %36 = vector.shape_cast %33 : vector<32x256xf32> to vector<1x32x256xf32>
    tpu.vector_store %arg6[%c0_20, %c0_21, %c0_22], %36 {strides = array<i32>} : memref<1x32x256xf32, #tpu.memory_space<vmem>>, vector<1x32x256xf32>,
    return
  }
  func.func @transform_0(%arg0: i32) -> (i32, i32, i32) {
    %c0_i32 = arith.constant 0 : i32
    %c0_i32_0 = arith.constant 0 : i32
    %c0_i32_1 = arith.constant 0 : i32
    return %arg0, %c0_i32, %c0_i32_0 : i32, i32, i32
  }
  func.func @transform_1(%arg0: i32) -> (i32, i32) {
    %c0_i32 = arith.constant 0 : i32
    %c0_i32_0 = arith.constant 0 : i32
    %c0_i32_1 = arith.constant 0 : i32
    return %c0_i32, %c0_i32_0 : i32, i32
  }
  func.func @transform_2(%arg0: i32) -> (i32, i32) {
    %c0_i32 = arith.constant 0 : i32
    %c0_i32_0 = arith.constant 0 : i32
    %c0_i32_1 = arith.constant 0 : i32
    return %c0_i32, %c0_i32_0 : i32, i32
  }
  func.func @transform_3(%arg0: i32) -> (i32, i32) {
    %c0_i32 = arith.constant 0 : i32
    %c0_i32_0 = arith.constant 0 : i32
    %c0_i32_1 = arith.constant 0 : i32
    return %c0_i32, %c0_i32_0 : i32, i32
  }
  func.func @transform_4(%arg0: i32) -> (i32, i32) {
    %c0_i32 = arith.constant 0 : i32
    %c0_i32_0 = arith.constant 0 : i32
    %c0_i32_1 = arith.constant 0 : i32
    return %c0_i32, %c0_i32_0 : i32, i32
  }
  func.func @transform_5(%arg0: i32) -> (i32, i32, i32) {
    %c0_i32 = arith.constant 0 : i32
    %c0_i32_0 = arith.constant 0 : i32
    %c0_i32_1 = arith.constant 0 : i32
    return %arg0, %c0_i32, %c0_i32_0 : i32, i32, i32
  }
}

</mosaic_0001>

<llo_original>
// kernel: basic_block_sem_forward.1
$region0: #{basic_block_sem_forward.1}
  #allocation0 [shape = 'u32[]', space=smem, size = 0x4, offset = 0x4, fixed_abs, tag = 'smem constant byte address 0x4 - core index']
  #allocation1 [shape = 'u32[144,128]{1,0:T(1,128)}', space=vmem, size = 0x12000, scoped, tag = 'internal scratch']
  %s0 = inlined_call_operand.vmem [shape: f32[2,36,256], index: 0, kind: input, shape index: {}]
  %s1 = inlined_call_operand.vmem [shape: f32[32,36], index: 1, kind: input, shape index: {}]
  %s2 = inlined_call_operand.vmem [shape: f32[32,1], index: 2, kind: input, shape index: {}]
  %s3 = inlined_call_operand.vmem [shape: f32[2,32], index: 3, kind: input, shape index: {}]
  %s4 = inlined_call_operand.vmem [shape: f32[32,2], index: 4, kind: input, shape index: {}]
  %s5 = inlined_call_operand.vmem [shape: f32[2,32,256], index: 5, kind: output, shape index: {}]
  %s6 = sld [smem:[#allocation0]]
  $region53: #{basic_block_sem_forward.1} parent=0
    _
  %s8 = ssub.s32 1, %s6
  %s9 = scalar_select 0, %s8, %s6
  loop: start=0, step=1, limit=4
  $region2: #{basic_block_sem_forward.1} parent=0 // loop_pre_header
    _
  $region3: #{basic_block_sem_forward.1} parent=0 // loop_header
    %s11 = sphi 0, %s15
    %p12 = scmp.ge.s32.totalorder %s11, 4
    %s21 = sphi 0, %s23
    %s24 = sphi 0, %s21
    %s25 = sphi 0, %s24
    %s41 = sphi 0, %s25
    %s45 = sphi 0, %s45
    %s47 = sphi 0, %s45
    %s48 = sphi 0, %s47
    %s62 = sphi 0, %s48
    %s66 = sphi 0, %s66
    %s68 = sphi 0, %s66
    %s69 = sphi 0, %s68
    %s83 = sphi 0, %s69
    %s87 = sphi 0, %s87
    %s89 = sphi 0, %s87
    %s90 = sphi 0, %s89
    %s104 = sphi 0, %s90
    %s108 = sphi 0, %s108
    %s110 = sphi 0, %s108
    %s111 = sphi 0, %s110
    %s125 = sphi 0, %s111
    %s131 = sphi 0, %s133
    %s134 = sphi 0, %s131
    %s135 = sphi 0, %s134
    %s151 = sphi 0, %s135
  $region4: #{basic_block_sem_forward.1} parent=0 // loop_header_branch
    %14 = sbr.rel (%p12) target = $region8
  $region5: #{basic_block_sem_forward.1} parent=0 // loop_body
    %s16 = ssub.s32 %s11, 1
    %s17 = ssub.s32 %s11, 2
    %s18 = sadd.s32 %s11, 1
    %s19 = ssub.s32 %s11, %s18
    %p20 = scmp.eq.s32.totalorder %s19, 0
    %s22 = sadd.s32 %s21, 1
    %s23 = scalar_select %p20, %s21, %s22
    %p26 = pneg %p20
    %p27 = scmp.eq.s32.totalorder %s11, 1
    %p28 = por %p26, %p27
    %p29 = scmp.ne.s32.totalorder %s21, %s24
    %p30 = scmp.eq.s32.totalorder %s11, 0
    %p31 = por %p29, %p30
    %p32 = scmp.ne.s32.totalorder %s21, %s24
    %p33 = scmp.eq.s32.totalorder %s16, 1
    %p34 = por %p32, %p33
    %p35 = scmp.ne.s32.totalorder %s24, %s25
    %p36 = scmp.eq.s32.totalorder %s16, 0
    %p37 = por %p35, %p36
    %p38 = scmp.ne.s32.totalorder %s24, %s25
    %p39 = scmp.eq.s32.totalorder %s17, 1
    %p40 = por %p38, %p39
    %p42 = scmp.ne.s32.totalorder %s25, %s41
    %p43 = scmp.eq.s32.totalorder %s17, 0
    %p44 = por %p42, %p43
    %s46 = sadd.s32 %s45, 1
    %p49 = scmp.eq.s32.totalorder %s11, 1
    %p50 = scmp.ne.s32.totalorder %s45, %s47
    %p51 = scmp.eq.s32.totalorder %s11, 0
    %p52 = por %p50, %p51
    %p53 = scmp.ne.s32.totalorder %s45, %s47
    %p54 = scmp.eq.s32.totalorder %s16, 1
    %p55 = por %p53, %p54
    %p56 = scmp.ne.s32.totalorder %s47, %s48
    %p57 = scmp.eq.s32.totalorder %s16, 0
    %p58 = por %p56, %p57
    %p59 = scmp.ne.s32.totalorder %s47, %s48
    %p60 = scmp.eq.s32.totalorder %s17, 1
    %p61 = por %p59, %p60
    %p63 = scmp.ne.s32.totalorder %s48, %s62
    %p64 = scmp.eq.s32.totalorder %s17, 0
    %p65 = por %p63, %p64
    %s67 = sadd.s32 %s66, 1
    %p70 = scmp.eq.s32.totalorder %s11, 1
    %p71 = scmp.ne.s32.totalorder %s66, %s68
    %p72 = scmp.eq.s32.totalorder %s11, 0
    %p73 = por %p71, %p72
    %p74 = scmp.ne.s32.totalorder %s66, %s68
    %p75 = scmp.eq.s32.totalorder %s16, 1
    %p76 = por %p74, %p75
    %p77 = scmp.ne.s32.totalorder %s68, %s69
    %p78 = scmp.eq.s32.totalorder %s16, 0
    %p79 = por %p77, %p78
    %p80 = scmp.ne.s32.totalorder %s68, %s69
    %p81 = scmp.eq.s32.totalorder %s17, 1
    %p82 = por %p80, %p81
    %p84 = scmp.ne.s32.totalorder %s69, %s83
    %p85 = scmp.eq.s32.totalorder %s17, 0
    %p86 = por %p84, %p85
    %s88 = sadd.s32 %s87, 1
    %p91 = scmp.eq.s32.totalorder %s11, 1
    %p92 = scmp.ne.s32.totalorder %s87, %s89
    %p93 = scmp.eq.s32.totalorder %s11, 0
    %p94 = por %p92, %p93
    %p95 = scmp.ne.s32.totalorder %s87, %s89
    %p96 = scmp.eq.s32.totalorder %s16, 1
    %p97 = por %p95, %p96
    %p98 = scmp.ne.s32.totalorder %s89, %s90
    %p99 = scmp.eq.s32.totalorder %s16, 0
    %p100 = por %p98, %p99
    %p101 = scmp.ne.s32.totalorder %s89, %s90
    %p102 = scmp.eq.s32.totalorder %s17, 1
    %p103 = por %p101, %p102
    %p105 = scmp.ne.s32.totalorder %s90, %s104
    %p106 = scmp.eq.s32.totalorder %s17, 0
    %p107 = por %p105, %p106
    %s109 = sadd.s32 %s108, 1
    %p112 = scmp.eq.s32.totalorder %s11, 1
    %p113 = scmp.ne.s32.totalorder %s108, %s110
    %p114 = scmp.eq.s32.totalorder %s11, 0
    %p115 = por %p113, %p114
    %p116 = scmp.ne.s32.totalorder %s108, %s110
    %p117 = scmp.eq.s32.totalorder %s16, 1
    %p118 = por %p116, %p117
    %p119 = scmp.ne.s32.totalorder %s110, %s111
    %p120 = scmp.eq.s32.totalorder %s16, 0
    %p121 = por %p119, %p120
    %p122 = scmp.ne.s32.totalorder %s110, %s111
    %p123 = scmp.eq.s32.totalorder %s17, 1
    %p124 = por %p122, %p123
    %p126 = scmp.ne.s32.totalorder %s111, %s125
    %p127 = scmp.eq.s32.totalorder %s17, 0
    %p128 = por %p126, %p127
    %s129 = ssub.s32 %s11, %s18
    %p130 = scmp.eq.s32.totalorder %s129, 0
    %s132 = sadd.s32 %s131, 1
    %s133 = scalar_select %p130, %s131, %s132
    %p136 = pneg %p130
    %p137 = scmp.eq.s32.totalorder %s11, 1
    %p138 = por %p136, %p137
    %p139 = scmp.ne.s32.totalorder %s131, %s134
    %p140 = scmp.eq.s32.totalorder %s11, 0
    %p141 = por %p139, %p140
    %p142 = scmp.ne.s32.totalorder %s131, %s134
    %p143 = scmp.eq.s32.totalorder %s16, 1
    %p144 = por %p142, %p143
    %p145 = scmp.ne.s32.totalorder %s134, %s135
    %p146 = scmp.eq.s32.totalorder %s16, 0
    %p147 = por %p145, %p146
    %p148 = scmp.ne.s32.totalorder %s134, %s135
    %p149 = scmp.eq.s32.totalorder %s17, 1
    %p150 = por %p148, %p149
    %p152 = scmp.ne.s32.totalorder %s135, %s151
    %p153 = scmp.eq.s32.totalorder %s17, 0
    %p154 = por %p152, %p153
    %p155 = scmp.le.s32.totalorder 1, %s11
    %p156 = scmp.lt.s32.totalorder %s11, 3
    %p157 = pnand %p155, %p156
    %p158 = pneg %p157
    // Predicated region
    $region9: #{basic_block_sem_forward.1} parent=5 // pred_check
      _
    $region10: #{basic_block_sem_forward.1} parent=5 // pred_check_branch
      %160 = sbr.rel (%p157) target = $region12
    $region11: #{basic_block_sem_forward.1} parent=5 // pred_region
      %s161 = ssub.s32 %s11, 1
      // Predicated region
      $region13: #{basic_block_sem_forward.1} parent=11 // pred_check
        %p162 = pneg %p58
      $region14: #{basic_block_sem_forward.1} parent=11 // pred_check_branch
        %164 = sbr.rel (%p162) target = $region16
      $region15: #{basic_block_sem_forward.1} parent=11 // pred_region
        _
      $region16: #{basic_block_sem_forward.1} parent=11 // pred_fallthru
        _
      // Predicated region
      $region17: #{basic_block_sem_forward.1} parent=11 // pred_check
        %p165 = pneg %p79
      $region18: #{basic_block_sem_forward.1} parent=11 // pred_check_branch
        %167 = sbr.rel (%p165) target = $region20
      $region19: #{basic_block_sem_forward.1} parent=11 // pred_region
        _
      $region20: #{basic_block_sem_forward.1} parent=11 // pred_fallthru
        _
      // Predicated region
      $region21: #{basic_block_sem_forward.1} parent=11 // pred_check
        %p168 = pneg %p100
      $region22: #{basic_block_sem_forward.1} parent=11 // pred_check_branch
        %170 = sbr.rel (%p168) target = $region24
      $region23: #{basic_block_sem_forward.1} parent=11 // pred_region
        _
      $region24: #{basic_block_sem_forward.1} parent=11 // pred_fallthru
        _
      // Predicated region
      $region25: #{basic_block_sem_forward.1} parent=11 // pred_check
        %p171 = pneg %p121
      $region26: #{basic_block_sem_forward.1} parent=11 // pred_check_branch
        %173 = sbr.rel (%p171) target = $region28
      $region27: #{basic_block_sem_forward.1} parent=11 // pred_region
        _
      $region28: #{basic_block_sem_forward.1} parent=11 // pred_fallthru
        _
    $region12: #{basic_block_sem_forward.1} parent=5 // pred_fallthru
      _
    %p174 = scmp.lt.s32.totalorder %s11, 2
    // Predicated region
    $region29: #{basic_block_sem_forward.1} parent=5 // pred_check
      %p175 = pneg %p174
    $region30: #{basic_block_sem_forward.1} parent=5 // pred_check_branch
      %177 = sbr.rel (%p175) target = $region32
    $region31: #{basic_block_sem_forward.1} parent=5 // pred_region
      // Predicated region
      $region33: #{basic_block_sem_forward.1} parent=31 // pred_check
        %p178 = pneg %p31
      $region34: #{basic_block_sem_forward.1} parent=31 // pred_check_branch
        %180 = sbr.rel (%p178) target = $region36
      $region35: #{basic_block_sem_forward.1} parent=31 // pred_region
        %p181 = scmp.lt.s32.totalorder %s11, 1
        %s182 = scalar_select %p181, %s11, 1
        %s183 = smul.addr %s182, 10
        %s184 = smul.addr %s183, 8
        %s185 = scalar_lea.vmem %s0, %s184
      $region36: #{basic_block_sem_forward.1} parent=31 // pred_fallthru
        _
    $region32: #{basic_block_sem_forward.1} parent=5 // pred_fallthru
      _
    %p186 = scmp.le.s32.totalorder 1, %s11
    %p187 = scmp.lt.s32.totalorder %s11, 3
    %p188 = pnand %p186, %p187
    %p189 = pneg %p188
    // Predicated region
    $region37: #{basic_block_sem_forward.1} parent=5 // pred_check
      _
    $region38: #{basic_block_sem_forward.1} parent=5 // pred_check_branch
      %191 = sbr.rel (%p188) target = $region40
    $region39: #{basic_block_sem_forward.1} parent=5 // pred_region
      %s192 = ssub.s32 %s11, 1
      %p193 = scmp.lt.s32.totalorder %s16, 1
      %s194 = scalar_select %p193, %s16, 1
      %s195 = smul.addr %s194, 10
      %s196 = smul.addr %s195, 8
      %s197 = scalar_lea.vmem %s0, %s196
      %p198 = pneg %p37
      %p199 = pneg %p34
      %p200 = pneg %p58
      %p201 = pneg %p55
      %p202 = pneg %p79
      %p203 = pneg %p76
      %p204 = pneg %p100
      %p205 = pneg %p97
      %p206 = pneg %p121
      %p207 = pneg %p118
      %p208 = pneg %p147
      %p209 = pneg %p144
      %p210 = scmp.lt.s32.totalorder %s16, 1
      %s211 = scalar_select %p210, %s16, 1
      %s212 = smul.addr %s211, 8
      %s213 = smul.addr %s212, 8
      %s214 = scalar_lea.vmem %s5, %s213
      %p215 = scmp.lt.s32.totalorder %s16, 1
      %s216 = scalar_select %p215, %s16, 1
      %s217 = smul.addr %s216, 10
      %s218 = smul.addr %s217, 8
      %s219 = scalar_lea.vmem %s0, %s218
      %p220 = scmp.lt.s32.totalorder %s16, 1
      %s221 = scalar_select %p220, %s16, 1
      %s222 = smul.addr %s221, 8
      %s223 = smul.addr %s222, 8
      %s224 = scalar_lea.vmem %s5, %s223
      %v225 = vld [vmem:[%s1] sm:$0xff]
      %v226 = vld [vmem:[%s1 + $0x8] sm:$0xff]
      %v227 = vld [vmem:[%s1 + $0x10] sm:$0xff]
      %v228 = vld [vmem:[%s1 + $0x18] sm:$0xff]
      %v229 = vld [vmem:[%s2] sm:$0xff]
      %v230 = vld [vmem:[%s2 + $0x8] sm:$0xff]
      %v231 = vld [vmem:[%s2 + $0x10] sm:$0xff]
      %v232 = vld [vmem:[%s2 + $0x18] sm:$0xff]
      %v233 = vld [vmem:[%s3] sm:$0x3]
      %v234 = vld [vmem:[%s4] sm:$0xff]
      %v235 = vld [vmem:[%s4 + $0x8] sm:$0xff]
      %v236 = vld [vmem:[%s4 + $0x10] sm:$0xff]
      %v237 = vld [vmem:[%s4 + $0x18] sm:$0xff]
      %v238 = vld [vmem:[%s219] sm:$0xff]
      %v239 = vld [vmem:[%s219 + $0x8] sm:$0xff]
      %v240 = vld [vmem:[%s219 + $0x10] sm:$0xff]
      %v241 = vld [vmem:[%s219 + $0x18] sm:$0xff]
      %v242 = vld [vmem:[%s219 + $0x20] sm:$0xff]
      %v243 = vld [vmem:[%s219 + $0x28] sm:$0xff]
      %v244 = vld [vmem:[%s219 + $0x30] sm:$0xff]
      %v245 = vld [vmem:[%s219 + $0x38] sm:$0xff]
      %v246 = vld [vmem:[%s219 + $0x40] sm:$0xf]
      %v247 = vld [vmem:[%s219 + $0x48] sm:$0xf]
      %249 = vset.pattern.permute.xlu0 0
      %250 = vperm.xlu0 %249, %v229
      %v251 = vpop.permute.xlu0 %250
      %254 = vset.pattern.permute.xlu0 0
      %255 = vperm.xlu0 %254, %v230
      %v256 = vpop.permute.xlu0 %255
      %259 = vset.pattern.permute.xlu0 0
      %260 = vperm.xlu0 %259, %v231
      %v261 = vpop.permute.xlu0 %260
      %264 = vset.pattern.permute.xlu0 0
      %265 = vperm.xlu0 %264, %v232
      %v266 = vpop.permute.xlu0 %265
      %vm268 = vcmask 293888
      %v270 = vsel %vm268, %v225, 0
      %v273 = vsel %vm268, %v226, 0
      %v276 = vsel %vm268, %v227, 0
      %v279 = vsel %vm268, %v228, 0
      %vm281 = vcmask 1043456
      %v283 = vsel %vm281, %v246, 0
      %v286 = vsel %vm281, %v247, 0
      %288 = vmatprep.subr.mxu0 0.0
      %289 = vmatpush1.msra.mxu0 0.0
      %290 = vmatprep.subr.mxu0 0.0
      %291 = vmatpush1.msra.mxu0 0.0
      %292 = vmatprep.subr.mxu0 0.0
      %293 = vmatpush1.msra.mxu0 0.0
      %294 = vmatprep.subr.mxu0 0.0
      %295 = vmatpush1.msra.mxu0 0.0
      %296 = vmatprep.subr.mxu0 0.0
      %297 = vmatpush1.msra.mxu0 0.0
      %298 = vmatprep.subr.mxu0 0.0
      %299 = vmatpush1.msra.mxu0 0.0
      %300 = vmatprep.subr.mxu0 0.0
      %301 = vmatpush1.msra.mxu0 0.0
      %302 = vmatprep.subr.mxu0 0.0
      %303 = vmatpush1.msra.mxu0 0.0
      %304 = vmatprep.subr.mxu0 0.0
      %305 = vmatpush1.msra.mxu0 0.0
      %306 = vmatprep.subr.mxu0 0.0
      %307 = vmatpush1.msra.mxu0 0.0
      %308 = vmatprep.subr.mxu0 0.0
      %309 = vmatpush1.msra.mxu0 0.0
      %310 = vmatprep.subr.mxu0 %v286
      %311 = vmatpush1.msra.mxu0 %v283
      %312 = vmatprep.subr.mxu0 %v245
      %313 = vmatpush1.msra.mxu0 %v244
      %314 = vmatprep.subr.mxu0 %v243
      %315 = vmatpush1.msra.mxu0 %v242
      %316 = vmatprep.subr.mxu0 %v241
      %317 = vmatpush1.msra.mxu0 %v240
      %318 = vmatprep.subr.mxu0 %v239
      %319 = vmatpush1.msra.mxu0 %v238
      %320 = vmatprep.subr.mxu0 0.0
      %321 = vmatpush2.msra.mxu0 0.0
      %322 = vmatprep.subr.mxu0 0.0
      %323 = vmatpush2.msra.mxu0 0.0
      %324 = vmatprep.subr.mxu0 0.0
      %325 = vmatpush2.msra.mxu0 0.0
      %326 = vmatprep.subr.mxu0 0.0
      %327 = vmatpush2.msra.mxu0 0.0
      %328 = vmatprep.subr.mxu0 0.0
      %329 = vmatpush2.msra.mxu0 0.0
      %330 = vmatprep.subr.mxu0 0.0
      %331 = vmatpush2.msra.mxu0 0.0
      %332 = vmatprep.subr.mxu0 0.0
      %333 = vmatpush2.msra.mxu0 0.0
      %334 = vmatprep.subr.mxu0 0.0
      %335 = vmatpush2.msra.mxu0 0.0
      %336 = vmatprep.subr.mxu0 0.0
      %337 = vmatpush2.msra.mxu0 0.0
      %338 = vmatprep.subr.mxu0 0.0
      %339 = vmatpush2.msra.mxu0 0.0
      %340 = vmatprep.subr.mxu0 0.0
      %341 = vmatpush2.msra.mxu0 0.0
      %342 = vmatprep.subr.mxu0 0.0
      %343 = vmatpush2.msra.mxu0 0.0
      %344 = vmatprep.subr.mxu0 0.0
      %345 = vmatpush2.msra.mxu0 0.0
      %346 = vmatprep.subr.mxu0 0.0
      %347 = vmatpush2.msra.mxu0 0.0
      %348 = vmatprep.subr.mxu0 0.0
      %349 = vmatpush2.msra.mxu0 0.0
      %350 = vmatprep.subr.mxu0 0.0
      %351 = vmatpush2.msra.mxu0 0.0
      %352 = vmatprep.mubr.f32.mxu0 0.0
      %353 = vmatmul.mubr.f32.gmra.mxu0 %v270
      %v354 = vpop.f32.mrf.mxu0
      %v355 = vadd.f32 %v251, %v354
      %v356 = vpop.f32.mrf.mxu0
      %v357 = vadd.f32 %v251, %v356
      %358 = vmatprep.mubr.f32.mxu0 0.0
      %359 = vmatmul.mubr.f32.gmra.mxu0 %v273
      %v360 = vpop.f32.mrf.mxu0
      %v361 = vadd.f32 %v256, %v360
      %v362 = vpop.f32.mrf.mxu0
      %v363 = vadd.f32 %v256, %v362
      %364 = vmatprep.mubr.f32.mxu0 0.0
      %365 = vmatmul.mubr.f32.gmra.mxu0 %v276
      %v366 = vpop.f32.mrf.mxu0
      %v367 = vadd.f32 %v261, %v366
      %v368 = vpop.f32.mrf.mxu0
      %v369 = vadd.f32 %v261, %v368
      %370 = vmatprep.mubr.f32.mxu0 0.0
      %371 = vmatmul.mubr.f32.gmra.mxu0 %v279
      %v372 = vpop.f32.mrf.mxu0
      %v373 = vadd.f32 %v266, %v372
      %v374 = vpop.f32.mrf.mxu0
      %v375 = vadd.f32 %v266, %v374
      %376 = vdwg.mxu0
      %v377 = vadd.f32 %v355, %v357
      %378 = vadd.xlane.f32.xlu0 %v377
      %v379 = vpop.xlane.xlu0 %378
      %v380 = vadd.f32 %v361, %v363
      %381 = vadd.xlane.f32.xlu0 %v380
      %v382 = vpop.xlane.xlu0 %381
      %v383 = vadd.f32 %v367, %v369
      %384 = vadd.xlane.f32.xlu0 %v383
      %v385 = vpop.xlane.xlu0 %384
      %v386 = vadd.f32 %v373, %v375
      %387 = vadd.xlane.f32.xlu0 %v386
      %v388 = vpop.xlane.xlu0 %387
      %v389 = vmul.f32 %v379, 0.00390625
      %v390 = vmul.f32 %v382, 0.00390625
      %v391 = vmul.f32 %v385, 0.00390625
      %v392 = vmul.f32 %v388, 0.00390625
      %v393 = vmax.f32 %v355, %v357
      %394 = vmax.xlane.f32.xlu0 %v393
      %v395 = vpop.xlane.xlu0 %394
      %v396 = vmax.f32 %v361, %v363
      %397 = vmax.xlane.f32.xlu0 %v396
      %v398 = vpop.xlane.xlu0 %397
      %v399 = vmax.f32 %v367, %v369
      %400 = vmax.xlane.f32.xlu0 %v399
      %v401 = vpop.xlane.xlu0 %400
      %v402 = vmax.f32 %v373, %v375
      %403 = vmax.xlane.f32.xlu0 %v402
      %v404 = vpop.xlane.xlu0 %403
      %vm405 = vcmask 7168
      %v406 = vsel %vm405, %v389, %v395
      %v407 = vsel %vm405, %v390, %v398
      %v408 = vsel %vm405, %v391, %v401
      %v409 = vsel %vm405, %v392, %v404
      %vm410 = vcmask 261120
      %v412 = vsel %vm410, %v233, 0
      %414 = vmatprep.subr.mxu0 0.0
      %415 = vmatpush1.msra.mxu0 0.0
      %416 = vmatprep.subr.mxu0 0.0
      %417 = vmatpush1.msra.mxu0 0.0
      %418 = vmatprep.subr.mxu0 0.0
      %419 = vmatpush1.msra.mxu0 0.0
      %420 = vmatprep.subr.mxu0 0.0
      %421 = vmatpush1.msra.mxu0 0.0
      %422 = vmatprep.subr.mxu0 0.0
      %423 = vmatpush1.msra.mxu0 0.0
      %424 = vmatprep.subr.mxu0 0.0
      %425 = vmatpush1.msra.mxu0 0.0
      %426 = vmatprep.subr.mxu0 0.0
      %427 = vmatpush1.msra.mxu0 0.0
      %428 = vmatprep.subr.mxu0 0.0
      %429 = vmatpush1.msra.mxu0 0.0
      %430 = vmatprep.subr.mxu0 0.0
      %431 = vmatpush1.msra.mxu0 0.0
      %432 = vmatprep.subr.mxu0 0.0
      %433 = vmatpush1.msra.mxu0 0.0
      %434 = vmatprep.subr.mxu0 0.0
      %435 = vmatpush1.msra.mxu0 0.0
      %436 = vmatprep.subr.mxu0 0.0
      %437 = vmatpush1.msra.mxu0 0.0
      %438 = vmatprep.subr.mxu0 0.0
      %439 = vmatpush1.msra.mxu0 %v409
      %440 = vmatprep.subr.mxu0 0.0
      %441 = vmatpush1.msra.mxu0 %v408
      %442 = vmatprep.subr.mxu0 0.0
      %443 = vmatpush1.msra.mxu0 %v407
      %444 = vmatprep.subr.mxu0 0.0
      %445 = vmatpush1.msra.mxu0 %v406
      %446 = vmatprep.subr.mxu0 0.0
      %447 = vmatpush2.msra.mxu0 0.0
      %448 = vmatprep.subr.mxu0 0.0
      %449 = vmatpush2.msra.mxu0 0.0
      %450 = vmatprep.subr.mxu0 0.0
      %451 = vmatpush2.msra.mxu0 0.0
      %452 = vmatprep.subr.mxu0 0.0
      %453 = vmatpush2.msra.mxu0 0.0
      %454 = vmatprep.subr.mxu0 0.0
      %455 = vmatpush2.msra.mxu0 0.0
      %456 = vmatprep.subr.mxu0 0.0
      %457 = vmatpush2.msra.mxu0 0.0
      %458 = vmatprep.subr.mxu0 0.0
      %459 = vmatpush2.msra.mxu0 0.0
      %460 = vmatprep.subr.mxu0 0.0
      %461 = vmatpush2.msra.mxu0 0.0
      %462 = vmatprep.subr.mxu0 0.0
      %463 = vmatpush2.msra.mxu0 0.0
      %464 = vmatprep.subr.mxu0 0.0
      %465 = vmatpush2.msra.mxu0 0.0
      %466 = vmatprep.subr.mxu0 0.0
      %467 = vmatpush2.msra.mxu0 0.0
      %468 = vmatprep.subr.mxu0 0.0
      %469 = vmatpush2.msra.mxu0 0.0
      %470 = vmatprep.subr.mxu0 0.0
      %471 = vmatpush2.msra.mxu0 0.0
      %472 = vmatprep.subr.mxu0 0.0
      %473 = vmatpush2.msra.mxu0 0.0
      %474 = vmatprep.subr.mxu0 0.0
      %475 = vmatpush2.msra.mxu0 0.0
      %476 = vmatprep.subr.mxu0 0.0
      %477 = vmatpush2.msra.mxu0 0.0
      %478 = vmatprep.mubr.f32.mxu0 0.0
      %479 = vmatmul.mubr.f32.gmra.mxu0 %v412
      %v480 = vpop.f32.mrf.mxu0
      %v481 = vadd.f32 0.0, %v480
      %v482 = vpop.f32.mrf.mxu0
      %483 = vdwg.mxu0
      %v484 = vmax.f32 %v481, 0.0
      %vm485 = vcmask 15360
      %v487 = vsel %vm485, %v234, 0
      %v490 = vsel %vm485, %v235, 0
      %v493 = vsel %vm485, %v236, 0
      %v496 = vsel %vm485, %v237, 0
      %vm498 = vcmask 1041408
      %v500 = vsel %vm498, %v484, 0
      %502 = vmatprep.subr.mxu0 0.0
      %503 = vmatpush1.msra.mxu0 0.0
      %504 = vmatprep.subr.mxu0 0.0
      %505 = vmatpush1.msra.mxu0 0.0
      %506 = vmatprep.subr.mxu0 0.0
      %507 = vmatpush1.msra.mxu0 0.0
      %508 = vmatprep.subr.mxu0 0.0
      %509 = vmatpush1.msra.mxu0 0.0
      %510 = vmatprep.subr.mxu0 0.0
      %511 = vmatpush1.msra.mxu0 0.0
      %512 = vmatprep.subr.mxu0 0.0
      %513 = vmatpush1.msra.mxu0 0.0
      %514 = vmatprep.subr.mxu0 0.0
      %515 = vmatpush1.msra.mxu0 0.0
      %516 = vmatprep.subr.mxu0 0.0
      %517 = vmatpush1.msra.mxu0 0.0
      %518 = vmatprep.subr.mxu0 0.0
      %519 = vmatpush1.msra.mxu0 0.0
      %520 = vmatprep.subr.mxu0 0.0
      %521 = vmatpush1.msra.mxu0 0.0
      %522 = vmatprep.subr.mxu0 0.0
      %523 = vmatpush1.msra.mxu0 0.0
      %524 = vmatprep.subr.mxu0 0.0
      %525 = vmatpush1.msra.mxu0 0.0
      %526 = vmatprep.subr.mxu0 0.0
      %527 = vmatpush1.msra.mxu0 0.0
      %528 = vmatprep.subr.mxu0 0.0
      %529 = vmatpush1.msra.mxu0 0.0
      %530 = vmatprep.subr.mxu0 0.0
      %531 = vmatpush1.msra.mxu0 0.0
      %532 = vmatprep.subr.mxu0 0.0
      %533 = vmatpush1.msra.mxu0 %v500
      %534 = vmatprep.subr.mxu0 0.0
      %535 = vmatpush2.msra.mxu0 0.0
      %536 = vmatprep.subr.mxu0 0.0
      %537 = vmatpush2.msra.mxu0 0.0
      %538 = vmatprep.subr.mxu0 0.0
      %539 = vmatpush2.msra.mxu0 0.0
      %540 = vmatprep.subr.mxu0 0.0
      %541 = vmatpush2.msra.mxu0 0.0
      %542 = vmatprep.subr.mxu0 0.0
      %543 = vmatpush2.msra.mxu0 0.0
      %544 = vmatprep.subr.mxu0 0.0
      %545 = vmatpush2.msra.mxu0 0.0
      %546 = vmatprep.subr.mxu0 0.0
      %547 = vmatpush2.msra.mxu0 0.0
      %548 = vmatprep.subr.mxu0 0.0
      %549 = vmatpush2.msra.mxu0 0.0
      %550 = vmatprep.subr.mxu0 0.0
      %551 = vmatpush2.msra.mxu0 0.0
      %552 = vmatprep.subr.mxu0 0.0
      %553 = vmatpush2.msra.mxu0 0.0
      %554 = vmatprep.subr.mxu0 0.0
      %555 = vmatpush2.msra.mxu0 0.0
      %556 = vmatprep.subr.mxu0 0.0
      %557 = vmatpush2.msra.mxu0 0.0
      %558 = vmatprep.subr.mxu0 0.0
      %559 = vmatpush2.msra.mxu0 0.0
      %560 = vmatprep.subr.mxu0 0.0
      %561 = vmatpush2.msra.mxu0 0.0
      %562 = vmatprep.subr.mxu0 0.0
      %563 = vmatpush2.msra.mxu0 0.0
      %564 = vmatprep.subr.mxu0 0.0
      %565 = vmatpush2.msra.mxu0 0.0
      %566 = vmatprep.mubr.f32.mxu0 0.0
      %567 = vmatmul.mubr.f32.gmra.mxu0 %v487
      %v568 = vpop.f32.mrf.mxu0
      %v569 = vadd.f32 0.0, %v568
      %v570 = vpop.f32.mrf.mxu0
      %571 = vmatprep.mubr.f32.mxu0 0.0
      %572 = vmatmul.mubr.f32.gmra.mxu0 %v490
      %v573 = vpop.f32.mrf.mxu0
      %v574 = vadd.f32 0.0, %v573
      %v575 = vpop.f32.mrf.mxu0
      %576 = vmatprep.mubr.f32.mxu0 0.0
      %577 = vmatmul.mubr.f32.gmra.mxu0 %v493
      %v578 = vpop.f32.mrf.mxu0
      %v579 = vadd.f32 0.0, %v578
      %v580 = vpop.f32.mrf.mxu0
      %581 = vmatprep.mubr.f32.mxu0 0.0
      %582 = vmatmul.mubr.f32.gmra.mxu0 %v496
      %v583 = vpop.f32.mrf.mxu0
      %v584 = vadd.f32 0.0, %v583
      %v585 = vpop.f32.mrf.mxu0
      %586 = vdwg.mxu0
      %591 = vrot.lane.b32.xlu0 %v569, 127
      %v592 = vpop.permute.xlu0 %591
      %593 = vrot.lane.b32.xlu0 %v574, 127
      %v594 = vpop.permute.xlu0 %593
      %595 = vrot.lane.b32.xlu0 %v579, 127
      %v596 = vpop.permute.xlu0 %595
      %597 = vrot.lane.b32.xlu0 %v584, 127
      %v598 = vpop.permute.xlu0 %597
      %v603 = vadd.f32 %v569, %v592
      %v604 = vadd.f32 %v574, %v594
      %v605 = vadd.f32 %v579, %v596
      %v606 = vadd.f32 %v584, %v598
      %v607 = vsub.f32 0.0, %v603
      %v608 = vsub.f32 0.0, %v604
      %v609 = vsub.f32 0.0, %v605
      %v610 = vsub.f32 0.0, %v606
      %v611 = vmul.f32 %v607, 1.442695
      %v612 = vpow.pop %v611
      %v613 = vmul.f32 %v608, 1.442695
      %v614 = vpow.pop %v613
      %v615 = vmul.f32 %v609, 1.442695
      %v616 = vpow.pop %v615
      %v617 = vmul.f32 %v610, 1.442695
      %v618 = vpow.pop %v617
      %v619 = vadd.f32 %v612, 1.0
      %v620 = vadd.f32 %v614, 1.0
      %v621 = vadd.f32 %v616, 1.0
      %v622 = vadd.f32 %v618, 1.0
      %v623 = vrcp.pop %v619
      %v624 = vmul.f32 1.0, %v623
      %v625 = vrcp.pop %v620
      %v626 = vmul.f32 1.0, %v625
      %v627 = vrcp.pop %v621
      %v628 = vmul.f32 1.0, %v627
      %v629 = vrcp.pop %v622
      %v630 = vmul.f32 1.0, %v629
      %632 = vset.pattern.permute.xlu0 0
      %633 = vperm.xlu0 %632, %v624
      %v634 = vpop.permute.xlu0 %633
      %637 = vset.pattern.permute.xlu0 0
      %638 = vperm.xlu0 %637, %v626
      %v639 = vpop.permute.xlu0 %638
      %642 = vset.pattern.permute.xlu0 0
      %643 = vperm.xlu0 %642, %v628
      %v644 = vpop.permute.xlu0 %643
      %647 = vset.pattern.permute.xlu0 0
      %648 = vperm.xlu0 %647, %v630
      %v649 = vpop.permute.xlu0 %648
      %v651 = vmul.f32 %v634, %v355
      %v652 = vmul.f32 %v634, %v357
      %v653 = vmul.f32 %v639, %v361
      %v654 = vmul.f32 %v639, %v363
      %v655 = vmul.f32 %v644, %v367
      %v656 = vmul.f32 %v644, %v369
      %v657 = vmul.f32 %v649, %v373
      %v658 = vmul.f32 %v649, %v375
      %v659 = vmax.f32 %v651, 0.0
      %v660 = vmax.f32 %v652, 0.0
      %v661 = vmax.f32 %v653, 0.0
      %v662 = vmax.f32 %v654, 0.0
      %v663 = vmax.f32 %v655, 0.0
      %v664 = vmax.f32 %v656, 0.0
      %v665 = vmax.f32 %v657, 0.0
      %v666 = vmax.f32 %v658, 0.0
      %667 = vst [vmem:[%s224] sm:$0xff] %v659
      %668 = vst [vmem:[%s224 + $0x8] sm:$0xff] %v660
      %669 = vst [vmem:[%s224 + $0x10] sm:$0xff] %v661
      %670 = vst [vmem:[%s224 + $0x18] sm:$0xff] %v662
      %671 = vst [vmem:[%s224 + $0x20] sm:$0xff] %v663
      %672 = vst [vmem:[%s224 + $0x28] sm:$0xff] %v664
      %673 = vst [vmem:[%s224 + $0x30] sm:$0xff] %v665
      %674 = vst [vmem:[%s224 + $0x38] sm:$0xff] %v666
      %p675 = scmp.lt.s32.totalorder %s16, 1
      %s676 = scalar_select %p675, %s16, 1
      %s677 = smul.addr %s676, 8
      %s678 = smul.addr %s677, 8
      %s679 = scalar_lea.vmem %s5, %s678
      // Predicated region
      $region41: #{basic_block_sem_forward.1} parent=39 // pred_check
        %p680 = pneg %p144
      $region42: #{basic_block_sem_forward.1} parent=39 // pred_check_branch
        %682 = sbr.rel (%p680) target = $region44
      $region43: #{basic_block_sem_forward.1} parent=39 // pred_region
        _
      $region44: #{basic_block_sem_forward.1} parent=39 // pred_fallthru
        _
    $region40: #{basic_block_sem_forward.1} parent=5 // pred_fallthru
      _
    %p683 = scmp.le.s32.totalorder 2, %s11
    // Predicated region
    $region45: #{basic_block_sem_forward.1} parent=5 // pred_check
      %p684 = pneg %p683
    $region46: #{basic_block_sem_forward.1} parent=5 // pred_check_branch
      %686 = sbr.rel (%p684) target = $region48
    $region47: #{basic_block_sem_forward.1} parent=5 // pred_region
      %s687 = ssub.s32 %s11, 2
      // Predicated region
      $region49: #{basic_block_sem_forward.1} parent=47 // pred_check
        %p688 = pneg %p150
      $region50: #{basic_block_sem_forward.1} parent=47 // pred_check_branch
        %690 = sbr.rel (%p688) target = $region52
      $region51: #{basic_block_sem_forward.1} parent=47 // pred_region
        %p691 = scmp.lt.s32.totalorder %s17, 1
        %s692 = scalar_select %p691, %s17, 1
        %s693 = smul.addr %s692, 8
        %s694 = smul.addr %s693, 8
        %s695 = scalar_lea.vmem %s5, %s694
      $region52: #{basic_block_sem_forward.1} parent=47 // pred_fallthru
        _
    $region48: #{basic_block_sem_forward.1} parent=5 // pred_fallthru
      _
  $region6: #{basic_block_sem_forward.1} parent=0 // loop_footer
    %s15 = sadd.s32 1, %s11
  $region7: #{basic_block_sem_forward.1} parent=0 // loop_footer_branch
    %10 = sbr.rel target = $region3
  $region8: #{basic_block_sem_forward.1} parent=0 // loop_exit
    _

</llo_original>
